<compile_context>
chip_gen: v6e
topology: v6e:2x2x1
jax: 0.10.0
libtpu: 0.0.40
codegen_flags: <defaults>
</compile_context>

<pallas_src>
import math

import jax
import jax.numpy as jnp
from jax.experimental import pallas as pl
from jax.experimental.pallas import tpu as pltpu


# ------------------------------ Pallas kernel ------------------------------ #
def _make_score_kernel(n_valid, tile_n, num_clusters):
    """Fused matmul + per-tile partial batch-softmax statistics.

    x_ref     : (tile_n, D)     — row tile of x (compute dtype)
    cw_ref    : (D, C+1)        — [centroids.T | w] (compute dtype)
    ys_ref    : (tile_n, C+1)   — f32 cluster pre-scores + attention score
    stats_ref : (1, 1, 2)       — f32 per-tile [max, sum(exp(s - max))]
    """
    c = num_clusters

    def kernel(x_ref, cw_ref, ys_ref, stats_ref):
        i = pl.program_id(0)

        # One MXU pass: cols [0:C] are cluster pre-scores, col C is x @ w.
        ys = jnp.dot(x_ref[...], cw_ref[...],
                     preferred_element_type=jnp.float32)
        ys_ref[...] = ys

        # Attention scores for this row tile, padded rows masked to -inf.
        s = ys[:, c:c + 1]                                          # (tile_n, 1)
        row = i * tile_n + jax.lax.broadcasted_iota(jnp.int32, (tile_n, 1), 0)
        s = jnp.where(row < n_valid, s, -jnp.inf)

        # Per-tile partial softmax stats; combined in the wrapper (no carried
        # scratch -> the grid axis is safely "parallel" for v7x megacore).
        m_t = jnp.max(s, axis=0, keepdims=True)                     # (1, 1)
        l_t = jnp.sum(jnp.exp(s - m_t), axis=0, keepdims=True)      # (1, 1)
        stats_ref[...] = jnp.concatenate([m_t, l_t], axis=1)[None]  # (1, 1, 2)

    return kernel


# -------------------------------- Wrapper ---------------------------------- #
def simplified_cross_attention(x, attention_weights, class_centroids, *,
                               tile_n=None, compute_dtype=jnp.bfloat16):
    """x: (N, D), attention_weights: (D,), class_centroids: (C, D) -> (N, C).

    compute_dtype: dtype of the streamed x / centroid matrix (default bf16 for
    ~2x less HBM traffic; accumulation is always f32).  Pass jnp.float32 for
    exact f32 semantics.
    """
    n, d = x.shape
    c, d2 = class_centroids.shape
    assert d == d2
    out_dtype = x.dtype
    compute_dtype = jnp.dtype(compute_dtype)
    cbytes = compute_dtype.itemsize

    # [centroids.T | w] : (D, C+1), cast (with x) to the compute dtype.
    cent_w = jnp.concatenate(
        [class_centroids.T.astype(jnp.float32),
         attention_weights.reshape(d, 1).astype(jnp.float32)],
        axis=1).astype(compute_dtype)
    x_c = x.astype(compute_dtype)

    # Row tile sizing: 3-deep-buffered x tiles kept under ~12 MiB so the
    # pipeline fits v5e's 16 MiB default scoped VMEM and v7x's 64 MiB physical
    # VMEM; rounded to the compute-dtype sublane packing; capped at 2048.
    sublane = 8 * (4 // cbytes)              # f32 -> 8 rows, bf16 -> 16 rows
    n_ceil = -(-n // sublane) * sublane
    if tile_n is None:
        x_budget = 12 * 1024 * 1024
        tile_n = min(2048, x_budget // (3 * d * cbytes))
    tile_n = min(int(tile_n), n_ceil)
    tile_n = max(sublane, (tile_n // sublane) * sublane)
    n_pad = -(-n // tile_n) * tile_n
    num_tiles = n_pad // tile_n
    if n_pad != n:
        x_c = jnp.pad(x_c, ((0, n_pad - n), (0, 0)))

    # DMA-dominated pipeline: 3-deep buffering on the x stream when useful.
    x_buffers = 3 if num_tiles >= 3 else 2
    if x_buffers == 3:
        x_spec = pl.BlockSpec((tile_n, d), lambda i: (i, 0),
                              pipeline_mode=pl.Buffered(3))
    else:
        x_spec = pl.BlockSpec((tile_n, d), lambda i: (i, 0))

    # Explicit scoped-VMEM limit with headroom (capped well under every
    # generation's physical VMEM).
    vmem_bytes = (x_buffers * tile_n * d * cbytes      # x stream
                  + 2 * d * (c + 1) * cbytes           # [centroids.T | w]
                  + 2 * tile_n * (c + 1) * 4           # ys stream
                  + (1 << 20))                         # stats + headroom
    vmem_limit = int(min(max(vmem_bytes, 4 << 20), 32 << 20))

    ys, stats = pl.pallas_call(
        _make_score_kernel(n, tile_n, c),
        out_shape=(
            jax.ShapeDtypeStruct((n_pad, c + 1), jnp.float32),
            jax.ShapeDtypeStruct((num_tiles, 1, 2), jnp.float32),
        ),
        grid_spec=pltpu.PrefetchScalarGridSpec(
            num_scalar_prefetch=0,
            grid=(num_tiles,),
            in_specs=[
                x_spec,
                pl.BlockSpec((d, c + 1), lambda i: (0, 0)),
            ],
            out_specs=[
                pl.BlockSpec((tile_n, c + 1), lambda i: (i, 0)),
                pl.BlockSpec((1, 1, 2), lambda i: (i, 0, 0)),
            ],
        ),
        compiler_params=pltpu.CompilerParams(
            dimension_semantics=("parallel",),
            vmem_limit_bytes=vmem_limit),
    )(x_c, cent_w)

    # Combine per-tile partial softmax stats (tiny logsumexp reduce) and apply
    # the per-row weight to the (N, C) pre-scores — a fused XLA epilogue over
    # a narrow slab; a second pallas_call here would be pure overhead.
    m_t = stats[:, 0, 0]                                 # (num_tiles,)
    l_t = stats[:, 0, 1]                                 # (num_tiles,)
    m = jnp.max(m_t)
    l = jnp.sum(l_t * jnp.exp(m_t - m))
    s = ys[:n, c]                                        # (N,)
    attn = jnp.exp(s - m) / l
    out = ys[:n, :c] * attn[:, None]
    return out.astype(out_dtype)


# ------------------------------- Reference --------------------------------- #
def _reference(x, w, centroids):
    scores = x @ w                                     # (N,)
    a = jax.nn.softmax(scores, axis=0)[:, None]        # (N, 1)
    return (x * a) @ centroids.T                       # (N, C)


if __name__ == "__main__":
    key = jax.random.PRNGKey(0)

    # --- Test 1: module-sized problem, exact f32 path (tight tolerance). ----
    N, INPUT_DIM, NUM_CLUSTERS = 8, 32, 4
    kx, kc, kw = jax.random.split(key, 3)
    x = jax.random.normal(kx, (N, INPUT_DIM), dtype=jnp.float32)
    # kaiming_normal_(mode='fan_out', nonlinearity='relu') on (C, D):
    #   fan_out = C, gain = sqrt(2), std = gain / sqrt(fan_out)
    std = math.sqrt(2.0 / NUM_CLUSTERS)
    class_centroids = std * jax.random.normal(
        kc, (NUM_CLUSTERS, INPUT_DIM), dtype=jnp.float32)
    attention_weights = jax.random.uniform(
        kw, (INPUT_DIM,), dtype=jnp.float32, minval=0.0, maxval=1.0)

    out = simplified_cross_attention(x, attention_weights, class_centroids,
                                     compute_dtype=jnp.float32)
    out = jax.block_until_ready(out)
    ref = _reference(x, attention_weights, class_centroids)
    assert out.shape == (N, NUM_CLUSTERS)
    assert jnp.allclose(out, ref, atol=1e-5, rtol=1e-4)

    # --- Test 2: multi-tile f32 path (padding mask + partial-stat combine ---
    # --- + 3-deep buffered x pipeline), non-multiple-of-tile N.            ---
    N2, D2, C2 = 300, 256, 4
    k2x, k2c, k2w = jax.random.split(jax.random.PRNGKey(0), 3)
    x2 = jax.random.normal(k2x, (N2, D2), dtype=jnp.float32)
    cent2 = math.sqrt(2.0 / C2) * jax.random.normal(
        k2c, (C2, D2), dtype=jnp.float32)
    w2 = jax.random.uniform(k2w, (D2,), dtype=jnp.float32)

    out2 = simplified_cross_attention(x2, w2, cent2, tile_n=128,
                                      compute_dtype=jnp.float32)
    out2 = jax.block_until_ready(out2)
    ref2 = _reference(x2, w2, cent2)
    assert out2.shape == (N2, C2)
    assert jnp.allclose(out2, ref2, atol=1e-5, rtol=1e-4)

    # --- Test 3: default bf16-compute path (HBM-traffic-optimized).        ---
    # MXU multiplies bf16 exactly and accumulates in f32, so comparing
    # against an f32 reference run on bf16-quantized inputs is tight.
    out3 = simplified_cross_attention(x2, w2, cent2)        # default bf16
    out3 = jax.block_until_ready(out3)
    q = lambda a: a.astype(jnp.bfloat16).astype(jnp.float32)
    ref3 = _reference(q(x2), q(w2), q(cent2))
    assert out3.shape == (N2, C2)
    assert jnp.allclose(out3, ref3, atol=1e-3, rtol=1e-2)

    print("KERNEL_OK")
</pallas_src>

<mosaic_0001>
module attributes {stable_mosaic.version = 11 : i64} {
  func.func @kernel(%arg0: i32, %arg1: memref<8x32xf32, #tpu.memory_space<vmem>>, %arg2: memref<32x5xf32, #tpu.memory_space<vmem>>, %arg3: memref<8x5xf32, #tpu.memory_space<vmem>>, %arg4: memref<1x1x2xf32, #tpu.memory_space<vmem>>) attributes {dimension_semantics = [#tpu.dimension_semantics<parallel>], iteration_bounds = array<i64: 1>, scalar_prefetch = 0 : i64, scratch_operands = 0 : i64, tpu.core_type = #tpu.core_type<tc>, window_params = [{transform_indices = @transform_0, window_bounds = array<i64: 8, 32>}, {pipeline_mode = #tpu.pipeline_mode<synchronous>, transform_indices = @transform_1, window_bounds = array<i64: 32, 5>}, {transform_indices = @transform_2, window_bounds = array<i64: 8, 5>}, {transform_indices = @transform_3, window_bounds = array<i64: 1, 1, 2>}]} {
    %c0 = arith.constant 0 : index
    %c0_0 = arith.constant 0 : index
    %0 = vector.load %arg1[%c0, %c0_0] : memref<8x32xf32, #tpu.memory_space<vmem>>, vector<8x32xf32>
    %c0_1 = arith.constant 0 : index
    %c0_2 = arith.constant 0 : index
    %1 = vector.load %arg2[%c0_1, %c0_2] : memref<32x5xf32, #tpu.memory_space<vmem>>, vector<32x5xf32>
    %cst = arith.constant dense<0.000000e+00> : vector<8x5xf32>
    %2 = tpu.matmul %0, %1, %cst {dimension_numbers = #tpu.dot_dimension_numbers<[1], [0], [0], [1], [0, 0, 1, 1], [], []>} : vector<8x32xf32>, vector<32x5xf32>, vector<8x5xf32> -> vector<8x5xf32>
    %c0_3 = arith.constant 0 : index
    %c0_4 = arith.constant 0 : index
    %3 = vector.load %arg3[%c0_3, %c0_4] : memref<8x5xf32, #tpu.memory_space<vmem>>, vector<8x5xf32>
    tpu.vector_store %arg3[%c0_3, %c0_4], %2 {strides = array<i32>} : memref<8x5xf32, #tpu.memory_space<vmem>>, vector<8x5xf32>,
    %4 = vector.extract_strided_slice %2 {offsets = [0, 4], sizes = [8, 1], strides = [1, 1]} : vector<8x5xf32> to vector<8x1xf32>
    %c8_i32 = arith.constant 8 : i32
    %5 = arith.muli %arg0, %c8_i32 : i32
    %6 = tpu.iota {dimensions = array<i32: 0>} : vector<8x1xi32>
    %7 = vector.broadcast %5 : i32 to vector<8x1xi32>
    %8 = arith.addi %7, %6 : vector<8x1xi32>
    %c8_i32_5 = arith.constant 8 : i32
    %9 = vector.broadcast %c8_i32_5 : i32 to vector<8x1xi32>
    %10 = arith.cmpi slt, %8, %9 : vector<8x1xi32>
    %cst_6 = arith.constant 0xFF800000 : f32
    %11 = vector.broadcast %cst_6 : f32 to vector<8x1xf32>
    %12 = arith.select %10, %4, %11 : vector<8x1xi1>, vector<8x1xf32>
    %cst_7 = arith.constant dense<0xFF800000> : vector<1xf32>
    %13 = vector.multi_reduction <maximumf>, %12, %cst_7 [0] : vector<8x1xf32> to vector<1xf32>
    %14 = vector.shape_cast %13 : vector<1xf32> to vector<1x1xf32>
    %15 = vector.broadcast %14 : vector<1x1xf32> to vector<8x1xf32>
    %16 = arith.subf %12, %15 : vector<8x1xf32>
    %17 = math.exp %16 : vector<8x1xf32>
    %cst_8 = arith.constant dense<0.000000e+00> : vector<1xf32>
    %18 = vector.multi_reduction <add>, %17, %cst_8 [0] : vector<8x1xf32> to vector<1xf32>
    %19 = vector.shape_cast %18 : vector<1xf32> to vector<1x1xf32>
    %20 = tpu.concatenate %14, %19 in 1 : vector<1x1xf32>, vector<1x1xf32> -> vector<1x2xf32>
    %21 = vector.shape_cast %20 : vector<1x2xf32> to vector<1x1x2xf32>
    %c0_9 = arith.constant 0 : index
    %c0_10 = arith.constant 0 : index
    %c0_11 = arith.constant 0 : index
    %22 = vector.load %arg4[%c0_9, %c0_10, %c0_11] : memref<1x1x2xf32, #tpu.memory_space<vmem>>, vector<1x1x2xf32>
    tpu.vector_store %arg4[%c0_9, %c0_10, %c0_11], %21 {strides = array<i32>} : memref<1x1x2xf32, #tpu.memory_space<vmem>>, vector<1x1x2xf32>,
    return
  }
  func.func @transform_0(%arg0: i32) -> (i32, i32) {
    %c0_i32 = arith.constant 0 : i32
    %c0_i32_0 = arith.constant 0 : i32
    return %arg0, %c0_i32 : i32, i32
  }
  func.func @transform_1(%arg0: i32) -> (i32, i32) {
    %c0_i32 = arith.constant 0 : i32
    %c0_i32_0 = arith.constant 0 : i32
    %c0_i32_1 = arith.constant 0 : i32
    return %c0_i32, %c0_i32_0 : i32, i32
  }
  func.func @transform_2(%arg0: i32) -> (i32, i32) {
    %c0_i32 = arith.constant 0 : i32
    %c0_i32_0 = arith.constant 0 : i32
    return %arg0, %c0_i32 : i32, i32
  }
  func.func @transform_3(%arg0: i32) -> (i32, i32, i32) {
    %c0_i32 = arith.constant 0 : i32
    %c0_i32_0 = arith.constant 0 : i32
    %c0_i32_1 = arith.constant 0 : i32
    return %arg0, %c0_i32, %c0_i32_0 : i32, i32, i32
  }
}

</mosaic_0001>

<llo_original>
// kernel: tpu_custom_call.1
$region0: #{tpu_custom_call.1}
  #allocation0 [shape = 'u32[]', space=smem, size = 0x4, offset = 0x4, fixed_abs, tag = 'smem constant byte address 0x4 - core index']
  #allocation1 [shape = 'u32[144,128]{1,0:T(1,128)}', space=vmem, size = 0x12000, scoped, tag = 'internal scratch']
  %s0 = inlined_call_operand.vmem [shape: f32[8,32], index: 0, kind: input, shape index: {}]
  %s1 = inlined_call_operand.vmem [shape: f32[32,5], index: 1, kind: input, shape index: {}]
  %s2 = inlined_call_operand.hbm [shape: f32[8,5], index: 2, kind: output, shape index: {0}]
  %s3 = inlined_call_operand.hbm [shape: f32[1,1,2], index: 3, kind: output, shape index: {1}]
  %4 = xla_tuple %s2, %s3
  %s5 = sld [smem:[#allocation0]]
  $region26: #{tpu_custom_call.1} parent=0
    _
  %s7 = ssub.s32 1, %s5
  %s8 = scalar_select 0, %s7, %s5
  $region1: #{tpu_custom_call.1} parent=0
    #allocation2 [shape = 'u8[4096]{0}', space=vmem, size = 0x1000, scoped, tag = 'output window, operand 0, single buffered']
    #allocation3 [shape = 's32[1]{0}', space=sflag, size = 0x4, scoped, tag = 'scoped memory for tpu_custom_call.1']
    #allocation4 [shape = 'u8[512]{0}', space=vmem, size = 0x400, scoped, tag = 'output window, operand 1, single buffered']
    #allocation5 [shape = 's32[1]{0}', space=sflag, size = 0x4, scoped, tag = 'scoped memory for tpu_custom_call.1']
    %9 = vsyncpa [#allocation3], 0
    %10 = vsyncpa [#allocation5], 0
    // Predicated region
    $region2: #{tpu_custom_call.1} parent=1 // pred_check
      _
    $region3: #{tpu_custom_call.1} parent=1 // pred_check_branch
      %12 = sbr.rel (0) target = $region5
    $region4: #{tpu_custom_call.1} parent=1 // pred_region
      _
    $region5: #{tpu_custom_call.1} parent=1 // pred_fallthru
      _
    // Predicated region
    $region6: #{tpu_custom_call.1} parent=1 // pred_check
      _
    $region7: #{tpu_custom_call.1} parent=1 // pred_check_branch
      %14 = sbr.rel (0) target = $region9
    $region8: #{tpu_custom_call.1} parent=1 // pred_region
      _
    $region9: #{tpu_custom_call.1} parent=1 // pred_fallthru
      _
    %v15 = vld [vmem:[%s0] sm:$0xff]
    %v16 = vld [vmem:[%s1] sm:$0xff]
    %v17 = vld [vmem:[%s1 + $0x8] sm:$0xff]
    %v18 = vld [vmem:[%s1 + $0x10] sm:$0xff]
    %v19 = vld [vmem:[%s1 + $0x18] sm:$0xff]
    %vm20 = vcmask 261120
    %v22 = vsel %vm20, %v15, 0
    %24 = vmatprep.subr.mxu0 0.0
    %25 = vmatpush1.msra.mxu0 0.0
    %26 = vmatprep.subr.mxu0 0.0
    %27 = vmatpush1.msra.mxu0 0.0
    %28 = vmatprep.subr.mxu0 0.0
    %29 = vmatpush1.msra.mxu0 0.0
    %30 = vmatprep.subr.mxu0 0.0
    %31 = vmatpush1.msra.mxu0 0.0
    %32 = vmatprep.subr.mxu0 0.0
    %33 = vmatpush1.msra.mxu0 0.0
    %34 = vmatprep.subr.mxu0 0.0
    %35 = vmatpush1.msra.mxu0 0.0
    %36 = vmatprep.subr.mxu0 0.0
    %37 = vmatpush1.msra.mxu0 0.0
    %38 = vmatprep.subr.mxu0 0.0
    %39 = vmatpush1.msra.mxu0 0.0
    %40 = vmatprep.subr.mxu0 0.0
    %41 = vmatpush1.msra.mxu0 0.0
    %42 = vmatprep.subr.mxu0 0.0
    %43 = vmatpush1.msra.mxu0 0.0
    %44 = vmatprep.subr.mxu0 0.0
    %45 = vmatpush1.msra.mxu0 0.0
    %46 = vmatprep.subr.mxu0 0.0
    %47 = vmatpush1.msra.mxu0 0.0
    %48 = vmatprep.subr.mxu0 0.0
    %49 = vmatpush1.msra.mxu0 %v19
    %50 = vmatprep.subr.mxu0 0.0
    %51 = vmatpush1.msra.mxu0 %v18
    %52 = vmatprep.subr.mxu0 0.0
    %53 = vmatpush1.msra.mxu0 %v17
    %54 = vmatprep.subr.mxu0 0.0
    %55 = vmatpush1.msra.mxu0 %v16
    %56 = vmatprep.subr.mxu0 0.0
    %57 = vmatpush2.msra.mxu0 0.0
    %58 = vmatprep.subr.mxu0 0.0
    %59 = vmatpush2.msra.mxu0 0.0
    %60 = vmatprep.subr.mxu0 0.0
    %61 = vmatpush2.msra.mxu0 0.0
    %62 = vmatprep.subr.mxu0 0.0
    %63 = vmatpush2.msra.mxu0 0.0
    %64 = vmatprep.subr.mxu0 0.0
    %65 = vmatpush2.msra.mxu0 0.0
    %66 = vmatprep.subr.mxu0 0.0
    %67 = vmatpush2.msra.mxu0 0.0
    %68 = vmatprep.subr.mxu0 0.0
    %69 = vmatpush2.msra.mxu0 0.0
    %70 = vmatprep.subr.mxu0 0.0
    %71 = vmatpush2.msra.mxu0 0.0
    %72 = vmatprep.subr.mxu0 0.0
    %73 = vmatpush2.msra.mxu0 0.0
    %74 = vmatprep.subr.mxu0 0.0
    %75 = vmatpush2.msra.mxu0 0.0
    %76 = vmatprep.subr.mxu0 0.0
    %77 = vmatpush2.msra.mxu0 0.0
    %78 = vmatprep.subr.mxu0 0.0
    %79 = vmatpush2.msra.mxu0 0.0
    %80 = vmatprep.subr.mxu0 0.0
    %81 = vmatpush2.msra.mxu0 0.0
    %82 = vmatprep.subr.mxu0 0.0
    %83 = vmatpush2.msra.mxu0 0.0
    %84 = vmatprep.subr.mxu0 0.0
    %85 = vmatpush2.msra.mxu0 0.0
    %86 = vmatprep.subr.mxu0 0.0
    %87 = vmatpush2.msra.mxu0 0.0
    %88 = vmatprep.mubr.f32.mxu0 0.0
    %89 = vmatmul.mubr.f32.gmra.mxu0 %v22
    %v90 = vpop.f32.mrf.mxu0
    %v91 = vadd.f32 0.0, %v90
    %v92 = vpop.f32.mrf.mxu0
    %93 = vdwg.mxu0
    %vm94 = vcmask 39936
    %95 = vst.msk [vmem:[#allocation2] sm:$0xff] %vm94, %v91
    %s96 = smul.u32 0, 8
    %v97 = vlaneseq
    %v98 = vshrl.u32 %v97, 7
    %v99 = vstv %s96
    %v100 = vadd.s32 %v99, %v98
    %vm101 = vcmp.lt.s32.totalorder %v100, 8
    %v102 = vsel %vm101, %v91, -inf
    %vm103 = vcmask 39968
    %v104 = vsel %vm103, %v102, -inf
    %v105 = vrot.slane %v104, 4
    %v106 = vmax.f32 %v104, %v105
    %v107 = vrot.slane %v106, 2
    %v108 = vmax.f32 %v106, %v107
    %v109 = vrot.slane %v108, 1
    %v110 = vmax.f32 %v108, %v109
    %v111 = vsub.f32 %v102, %v110
    %v112 = vmul.f32 %v111, 1.442695
    %v113 = vpow.pop %v112
    %v114 = vsel %vm103, %v113, 0.0
    %v115 = vrot.slane %v114, 4
    %v116 = vadd.f32 %v114, %v115
    %v117 = vrot.slane %v116, 2
    %v118 = vadd.f32 %v116, %v117
    %v119 = vrot.slane %v118, 1
    %v120 = vadd.f32 %v118, %v119
    %122 = vrot.lane.b32.xlu0 %v110, 124
    %v123 = vpop.permute.xlu0 %122
    %126 = vrot.lane.b32.xlu0 %v120, 125
    %v127 = vpop.permute.xlu0 %126
    %vm129 = vcmask 7168
    %v130 = vsel %vm129, %v123, %v127
    %vm131 = vcmask 8192
    %132 = vst.msk [vmem:[#allocation4] sm:$0x1] %vm131, %v130
    // Predicated region
    $region10: #{tpu_custom_call.1} parent=1 // pred_check
      _
    $region11: #{tpu_custom_call.1} parent=1 // pred_check_branch
      %134 = sbr.rel (0) target = $region13
    $region12: #{tpu_custom_call.1} parent=1 // pred_region
      %s136 = ssub.s32 128, 128
      %137 = vsyncadd [#allocation3], %s136
      %s139 = sshll.u32 [#allocation2], 4
      %s140 = int_to_ptr.vmem [resolvable:$true] %s139
      %142 = dma.vmem_to_hbm [thread:$0]  %s140, 128, %s2, [#allocation3]
    $region13: #{tpu_custom_call.1} parent=1 // pred_fallthru
      _
    // Predicated region
    $region14: #{tpu_custom_call.1} parent=1 // pred_check
      _
    $region15: #{tpu_custom_call.1} parent=1 // pred_check_branch
      %144 = sbr.rel (0) target = $region17
    $region16: #{tpu_custom_call.1} parent=1 // pred_region
      %s146 = ssub.s32 16, 16
      %147 = vsyncadd [#allocation5], %s146
      %s149 = sshll.u32 [#allocation4], 4
      %s150 = int_to_ptr.vmem [resolvable:$true] %s149
      %152 = dma.vmem_to_hbm [thread:$0]  %s150, 16, %s3, [#allocation5]
    $region17: #{tpu_custom_call.1} parent=1 // pred_fallthru
      _
    // Predicated region
    $region18: #{tpu_custom_call.1} parent=1 // pred_check
      _
    $region19: #{tpu_custom_call.1} parent=1 // pred_check_branch
      %154 = sbr.rel (0) target = $region21
    $region20: #{tpu_custom_call.1} parent=1 // pred_region
      %155 = dma.done [#allocation3], 128
    $region21: #{tpu_custom_call.1} parent=1 // pred_fallthru
      _
    // Predicated region
    $region22: #{tpu_custom_call.1} parent=1 // pred_check
      _
    $region23: #{tpu_custom_call.1} parent=1 // pred_check_branch
      %157 = sbr.rel (0) target = $region25
    $region24: #{tpu_custom_call.1} parent=1 // pred_region
      %158 = dma.done [#allocation5], 16
    $region25: #{tpu_custom_call.1} parent=1 // pred_fallthru
      _
    %159 = vsyncpa [#allocation3], 1
    %160 = vsyncpa [#allocation5], 1

</llo_original>
